<compile_context>
chip_gen: v5e
topology: v5e:2x2
jax: 0.10.0
libtpu: 0.0.40
codegen_flags: <defaults>
</compile_context>

<pallas_src>
import functools

import jax
import jax.numpy as jnp
from jax.experimental import pallas as pl
from jax.experimental.pallas import tpu as pltpu


_SUB = 256  # compute sub-tile (rows): keeps h1/h2/h3 in vregs at large batch tiles


def _round_up(n, m):
    return ((n + m - 1) // m) * m


def mlp_softmax_kernel(x_ref, w1_ref, b1_ref, w2_ref, b2_ref,
                       w3_ref, b3_ref, w4_ref, b4_ref, o_ref):
    tm = x_ref.shape[0]
    chunk = _SUB if (tm % _SUB == 0) else tm
    nchunks = tm // chunk

    # Hoist resident weights/biases out of the sub-chunk loop.
    w1 = w1_ref[...]; b1 = b1_ref[...]
    w2 = w2_ref[...]; b2 = b2_ref[...]
    w3 = w3_ref[...]; b3 = b3_ref[...]
    w4 = w4_ref[...]; b4 = b4_ref[...]

    def sub(c, carry):
        row = pl.multiple_of(c * chunk, chunk)
        x = x_ref[pl.ds(row, chunk), :].astype(jnp.bfloat16)

        # Linear(256 -> 64) + ReLU  (bf16 MXU operands, f32 accumulate)
        h = jnp.dot(x, w1, preferred_element_type=jnp.float32) + b1
        h = jnp.maximum(h, 0.0)
        # TODO(synk): Dropout1d skipped — inference semantics (identity). Training-mode
        # channel dropout would use pltpu.prng_seed / pltpu.stateful_bernoulli.

        # Linear(64 -> 32) + ReLU
        h = jnp.dot(h.astype(jnp.bfloat16), w2, preferred_element_type=jnp.float32) + b2
        h = jnp.maximum(h, 0.0)

        # Linear(32 -> 16) + LeakyReLU (PyTorch default negative_slope = 0.01)
        h = jnp.dot(h.astype(jnp.bfloat16), w3, preferred_element_type=jnp.float32) + b3
        h = jnp.where(h > 0, h, 0.01 * h)

        # Linear(16 -> 10): tiny matmul, kept f32 for logit precision.
        logits = jnp.dot(h, w4, preferred_element_type=jnp.float32) + b4

        # softmax along dim=1; reciprocal uses the (otherwise idle) EUP slot.
        m = jnp.max(logits, axis=-1, keepdims=True)
        e = jnp.exp(logits - m)
        inv = pl.reciprocal(jnp.sum(e, axis=-1, keepdims=True), approx=False)
        o_ref[pl.ds(row, chunk), :] = (e * inv).astype(o_ref.dtype)
        return carry

    jax.lax.fori_loop(0, nchunks, sub, 0, unroll=True)


@functools.partial(jax.jit, static_argnames=("block_m",))
def fully_connected_forward(x, params, *, block_m=2048):
    """x: (B, 256) bf16 (preferred) or f32. params: w1..w4 (in,out), b1..b4 (1,out)."""
    B, F = x.shape
    assert F == 256, "FullyConnected expects 256 input features"
    w1, b1 = params["w1"], params["b1"]
    w2, b2 = params["w2"], params["b2"]
    w3, b3 = params["w3"], params["b3"]
    w4, b4 = params["w4"], params["b4"]

    # Batch tile: sublane-aligned, capped at block_m. No jnp.pad: Pallas masks the
    # partial last block, so non-divisible batches cost no extra HBM round trip.
    bm = _round_up(B, 8)
    tm = min(block_m, bm)
    # v7x has two TensorCores sharing the "parallel" grid axis: for large batches make
    # sure there are >= 2 grid steps so neither core idles. On 1-TC chips the extra
    # step costs ~0.35 us (noise at these sizes).
    if bm >= 2048 and pl.cdiv(bm, tm) < 2:
        tm = pl.cdiv(bm, 2)
    # Align the tile to the compute sub-chunk when large (enables vreg-resident
    # intermediates), otherwise just to the 8-row sublane granule.
    tm = _round_up(tm, _SUB) if tm >= 1024 else _round_up(tm, 8)
    grid = (pl.cdiv(B, tm),)

    x_spec = pl.BlockSpec((tm, 256), lambda i: (i, 0))
    out_spec = pl.BlockSpec((tm, 10), lambda i: (i, 0))
    # Weights/biases: full arrays, same block every step -> resident in VMEM
    # (no re-DMA across batch tiles).
    const = lambda a: pl.BlockSpec(a.shape, lambda i: (0,) * a.ndim)

    # Default scoped VMEM (16 MiB on v5e) is plenty up to tm=2048 with bf16 x; only
    # raise the limit if the caller pushes the tile beyond that.
    vmem_limit = 64 * 1024 * 1024 if tm > 2048 else None

    return pl.pallas_call(
        mlp_softmax_kernel,
        out_shape=jax.ShapeDtypeStruct((B, 10), jnp.float32),
        grid=grid,
        in_specs=[x_spec, const(w1), const(b1), const(w2), const(b2),
                  const(w3), const(b3), const(w4), const(b4)],
        out_specs=out_spec,
        compiler_params=pltpu.CompilerParams(
            dimension_semantics=("parallel",),
            vmem_limit_bytes=vmem_limit),
    )(x, w1, b1, w2, b2, w3, b3, w4, b4)


def init_params(key):
    """Deterministic init mimicking nn.Linear's uniform(-1/sqrt(fan_in), 1/sqrt(fan_in)).

    w1..w3 are stored bf16 (MXU-native); w4 and all biases stay f32.
    """
    dims = [(256, 64), (64, 32), (32, 16), (16, 10)]
    params = {}
    keys = jax.random.split(key, 2 * len(dims))
    for i, (fin, fout) in enumerate(dims):
        bound = 1.0 / jnp.sqrt(fin)
        w = jax.random.uniform(keys[2 * i], (fin, fout), jnp.float32, -bound, bound)
        b = jax.random.uniform(keys[2 * i + 1], (1, fout), jnp.float32, -bound, bound)
        params[f"w{i + 1}"] = w if i == 3 else w.astype(jnp.bfloat16)
        params[f"b{i + 1}"] = b
    return params


def _ref_matched(x, p):
    """Plain-JAX reference with the same mixed precision as the kernel."""
    h = jnp.dot(x.astype(jnp.bfloat16), p["w1"], preferred_element_type=jnp.float32) + p["b1"]
    h = jnp.maximum(h, 0.0)
    h = jnp.dot(h.astype(jnp.bfloat16), p["w2"], preferred_element_type=jnp.float32) + p["b2"]
    h = jnp.maximum(h, 0.0)
    h = jnp.dot(h.astype(jnp.bfloat16), p["w3"], preferred_element_type=jnp.float32) + p["b3"]
    h = jnp.where(h > 0, h, 0.01 * h)
    logits = jnp.dot(h, p["w4"], preferred_element_type=jnp.float32) + p["b4"]
    return jax.nn.softmax(logits, axis=1)


def _ref_f32(x, p):
    """Full-f32 reference of the PyTorch module (loose check for bf16 path)."""
    h = jnp.maximum(x.astype(jnp.float32) @ p["w1"].astype(jnp.float32) + p["b1"], 0.0)
    h = jnp.maximum(h @ p["w2"].astype(jnp.float32) + p["b2"], 0.0)
    h = h @ p["w3"].astype(jnp.float32) + p["b3"]
    h = jnp.where(h > 0, h, 0.01 * h)
    logits = h @ p["w4"] + p["b4"]
    return jax.nn.softmax(logits, axis=1)


if __name__ == "__main__":
    key = jax.random.PRNGKey(0)
    k_x, k_p = jax.random.split(key)
    B = 8
    # Producer hands bf16 activations: halves the dominant HBM read of the kernel.
    x = jax.random.normal(k_x, (B, 256), jnp.float32).astype(jnp.bfloat16)
    params = init_params(k_p)

    out = fully_connected_forward(x, params)
    jax.block_until_ready(out)

    # sanity: shape + softmax rows sum to 1
    assert out.shape == (B, 10)
    assert jnp.allclose(jnp.sum(out, axis=1), jnp.ones((B,)), atol=1e-5)

    # tight check against a precision-matched reference, loose check against full f32
    assert jnp.allclose(out, _ref_matched(x, params), atol=2e-5)
    assert jnp.allclose(out, _ref_f32(x, params), atol=3e-2)

    # non-tile-aligned batch exercises the masked partial last block (no jnp.pad path)
    B2 = 13
    x2 = jax.random.normal(jax.random.PRNGKey(1), (B2, 256), jnp.float32).astype(jnp.bfloat16)
    out2 = fully_connected_forward(x2, params)
    jax.block_until_ready(out2)
    assert out2.shape == (B2, 10)
    assert jnp.allclose(jnp.sum(out2, axis=1), jnp.ones((B2,)), atol=1e-5)
    assert jnp.allclose(out2, _ref_matched(x2, params), atol=2e-5)

    print("KERNEL_OK")
</pallas_src>

<mosaic_0001>
module attributes {stable_mosaic.version = 11 : i64} {
  func.func @mlp_softmax_kernel(%arg0: i32, %arg1: memref<8x256xbf16, #tpu.memory_space<vmem>>, %arg2: memref<256x64xbf16, #tpu.memory_space<vmem>>, %arg3: memref<1x64xf32, #tpu.memory_space<vmem>>, %arg4: memref<64x32xbf16, #tpu.memory_space<vmem>>, %arg5: memref<1x32xf32, #tpu.memory_space<vmem>>, %arg6: memref<32x16xbf16, #tpu.memory_space<vmem>>, %arg7: memref<1x16xf32, #tpu.memory_space<vmem>>, %arg8: memref<16x10xf32, #tpu.memory_space<vmem>>, %arg9: memref<1x10xf32, #tpu.memory_space<vmem>>, %arg10: memref<8x10xf32, #tpu.memory_space<vmem>>) attributes {dimension_semantics = [#tpu.dimension_semantics<parallel>], iteration_bounds = array<i64: 1>, scalar_prefetch = 0 : i64, scratch_operands = 0 : i64, tpu.core_type = #tpu.core_type<tc>, window_params = [{transform_indices = @transform_0, window_bounds = array<i64: 8, 256>}, {pipeline_mode = #tpu.pipeline_mode<synchronous>, transform_indices = @transform_1, window_bounds = array<i64: 256, 64>}, {pipeline_mode = #tpu.pipeline_mode<synchronous>, transform_indices = @transform_2, window_bounds = array<i64: 1, 64>}, {pipeline_mode = #tpu.pipeline_mode<synchronous>, transform_indices = @transform_3, window_bounds = array<i64: 64, 32>}, {pipeline_mode = #tpu.pipeline_mode<synchronous>, transform_indices = @transform_4, window_bounds = array<i64: 1, 32>}, {pipeline_mode = #tpu.pipeline_mode<synchronous>, transform_indices = @transform_5, window_bounds = array<i64: 32, 16>}, {pipeline_mode = #tpu.pipeline_mode<synchronous>, transform_indices = @transform_6, window_bounds = array<i64: 1, 16>}, {pipeline_mode = #tpu.pipeline_mode<synchronous>, transform_indices = @transform_7, window_bounds = array<i64: 16, 10>}, {pipeline_mode = #tpu.pipeline_mode<synchronous>, transform_indices = @transform_8, window_bounds = array<i64: 1, 10>}, {transform_indices = @transform_9, window_bounds = array<i64: 8, 10>}]} {
    %c0 = arith.constant 0 : index
    %c0_0 = arith.constant 0 : index
    %0 = vector.load %arg2[%c0, %c0_0] : memref<256x64xbf16, #tpu.memory_space<vmem>>, vector<256x64xbf16>
    %c0_1 = arith.constant 0 : index
    %c0_2 = arith.constant 0 : index
    %1 = vector.load %arg3[%c0_1, %c0_2] : memref<1x64xf32, #tpu.memory_space<vmem>>, vector<1x64xf32>
    %c0_3 = arith.constant 0 : index
    %c0_4 = arith.constant 0 : index
    %2 = vector.load %arg4[%c0_3, %c0_4] : memref<64x32xbf16, #tpu.memory_space<vmem>>, vector<64x32xbf16>
    %c0_5 = arith.constant 0 : index
    %c0_6 = arith.constant 0 : index
    %3 = vector.load %arg5[%c0_5, %c0_6] : memref<1x32xf32, #tpu.memory_space<vmem>>, vector<1x32xf32>
    %c0_7 = arith.constant 0 : index
    %c0_8 = arith.constant 0 : index
    %4 = vector.load %arg6[%c0_7, %c0_8] : memref<32x16xbf16, #tpu.memory_space<vmem>>, vector<32x16xbf16>
    %c0_9 = arith.constant 0 : index
    %c0_10 = arith.constant 0 : index
    %5 = vector.load %arg7[%c0_9, %c0_10] : memref<1x16xf32, #tpu.memory_space<vmem>>, vector<1x16xf32>
    %c0_11 = arith.constant 0 : index
    %c0_12 = arith.constant 0 : index
    %6 = vector.load %arg8[%c0_11, %c0_12] : memref<16x10xf32, #tpu.memory_space<vmem>>, vector<16x10xf32>
    %c0_13 = arith.constant 0 : index
    %c0_14 = arith.constant 0 : index
    %7 = vector.load %arg9[%c0_13, %c0_14] : memref<1x10xf32, #tpu.memory_space<vmem>>, vector<1x10xf32>
    %c0_i32 = arith.constant 0 : i32
    %c8_i32 = arith.constant 8 : i32
    %8 = arith.muli %c0_i32, %c8_i32 : i32
    %9 = tpu.assume_multiple %8, 8 : i32
    %10 = arith.index_cast %9 : i32 to index
    %c0_15 = arith.constant 0 : index
    %11 = vector.load %arg1[%10, %c0_15] : memref<8x256xbf16, #tpu.memory_space<vmem>>, vector<8x256xbf16>
    %cst = arith.constant dense<0.000000e+00> : vector<8x64xf32>
    %12 = tpu.matmul %11, %0, %cst {dimension_numbers = #tpu.dot_dimension_numbers<[1], [0], [0], [1], [0, 0, 1, 1], [], []>} : vector<8x256xbf16>, vector<256x64xbf16>, vector<8x64xf32> -> vector<8x64xf32>
    %13 = vector.broadcast %1 : vector<1x64xf32> to vector<8x64xf32>
    %14 = arith.addf %12, %13 : vector<8x64xf32>
    %cst_16 = arith.constant 0.000000e+00 : f32
    %15 = vector.broadcast %cst_16 : f32 to vector<8x64xf32>
    %16 = arith.maximumf %14, %15 : vector<8x64xf32>
    %17 = arith.truncf %16 : vector<8x64xf32> to vector<8x64xbf16>
    %cst_17 = arith.constant dense<0.000000e+00> : vector<8x32xf32>
    %18 = tpu.matmul %17, %2, %cst_17 {dimension_numbers = #tpu.dot_dimension_numbers<[1], [0], [0], [1], [0, 0, 1, 1], [], []>} : vector<8x64xbf16>, vector<64x32xbf16>, vector<8x32xf32> -> vector<8x32xf32>
    %19 = vector.broadcast %3 : vector<1x32xf32> to vector<8x32xf32>
    %20 = arith.addf %18, %19 : vector<8x32xf32>
    %cst_18 = arith.constant 0.000000e+00 : f32
    %21 = vector.broadcast %cst_18 : f32 to vector<8x32xf32>
    %22 = arith.maximumf %20, %21 : vector<8x32xf32>
    %23 = arith.truncf %22 : vector<8x32xf32> to vector<8x32xbf16>
    %cst_19 = arith.constant dense<0.000000e+00> : vector<8x16xf32>
    %24 = tpu.matmul %23, %4, %cst_19 {dimension_numbers = #tpu.dot_dimension_numbers<[1], [0], [0], [1], [0, 0, 1, 1], [], []>} : vector<8x32xbf16>, vector<32x16xbf16>, vector<8x16xf32> -> vector<8x16xf32>
    %25 = vector.broadcast %5 : vector<1x16xf32> to vector<8x16xf32>
    %26 = arith.addf %24, %25 : vector<8x16xf32>
    %cst_20 = arith.constant 0.000000e+00 : f32
    %27 = vector.broadcast %cst_20 : f32 to vector<8x16xf32>
    %28 = arith.cmpf ogt, %26, %27 : vector<8x16xf32>
    %cst_21 = arith.constant 0.00999999977 : f32
    %29 = vector.broadcast %cst_21 : f32 to vector<8x16xf32>
    %30 = arith.mulf %29, %26 : vector<8x16xf32>
    %31 = arith.select %28, %26, %30 : vector<8x16xi1>, vector<8x16xf32>
    %cst_22 = arith.constant dense<0.000000e+00> : vector<8x10xf32>
    %32 = tpu.matmul %31, %6, %cst_22 {dimension_numbers = #tpu.dot_dimension_numbers<[1], [0], [0], [1], [0, 0, 1, 1], [], []>} : vector<8x16xf32>, vector<16x10xf32>, vector<8x10xf32> -> vector<8x10xf32>
    %33 = vector.broadcast %7 : vector<1x10xf32> to vector<8x10xf32>
    %34 = arith.addf %32, %33 : vector<8x10xf32>
    %cst_23 = arith.constant dense<0xFF800000> : vector<8xf32>
    %35 = vector.multi_reduction <maximumf>, %34, %cst_23 [1] : vector<8x10xf32> to vector<8xf32>
    %36 = vector.shape_cast %35 : vector<8xf32> to vector<8x1xf32>
    %37 = vector.broadcast %36 : vector<8x1xf32> to vector<8x10xf32>
    %38 = arith.subf %34, %37 : vector<8x10xf32>
    %39 = math.exp %38 : vector<8x10xf32>
    %cst_24 = arith.constant dense<0.000000e+00> : vector<8xf32>
    %40 = vector.multi_reduction <add>, %39, %cst_24 [1] : vector<8x10xf32> to vector<8xf32>
    %41 = vector.shape_cast %40 : vector<8xf32> to vector<8x1xf32>
    %42 = tpu.reciprocal %41 : vector<8x1xf32> -> vector<8x1xf32>
    %43 = vector.broadcast %42 : vector<8x1xf32> to vector<8x10xf32>
    %44 = arith.mulf %39, %43 : vector<8x10xf32>
    %45 = arith.index_cast %9 : i32 to index
    %c0_25 = arith.constant 0 : index
    %46 = vector.load %arg10[%45, %c0_25] : memref<8x10xf32, #tpu.memory_space<vmem>>, vector<8x10xf32>
    tpu.vector_store %arg10[%45, %c0_25], %44 {strides = array<i32>} : memref<8x10xf32, #tpu.memory_space<vmem>>, vector<8x10xf32>,
    %c1_i32 = arith.constant 1 : i32
    return
  }
  func.func @transform_0(%arg0: i32) -> (i32, i32) {
    %c0_i32 = arith.constant 0 : i32
    %c0_i32_0 = arith.constant 0 : i32
    return %arg0, %c0_i32 : i32, i32
  }
  func.func @transform_1(%arg0: i32) -> (i32, i32) {
    %c0_i32 = arith.constant 0 : i32
    %c0_i32_0 = arith.constant 0 : i32
    %c0_i32_1 = arith.constant 0 : i32
    return %c0_i32, %c0_i32_0 : i32, i32
  }
  func.func @transform_2(%arg0: i32) -> (i32, i32) {
    %c0_i32 = arith.constant 0 : i32
    %c0_i32_0 = arith.constant 0 : i32
    %c0_i32_1 = arith.constant 0 : i32
    return %c0_i32, %c0_i32_0 : i32, i32
  }
  func.func @transform_3(%arg0: i32) -> (i32, i32) {
    %c0_i32 = arith.constant 0 : i32
    %c0_i32_0 = arith.constant 0 : i32
    %c0_i32_1 = arith.constant 0 : i32
    return %c0_i32, %c0_i32_0 : i32, i32
  }
  func.func @transform_4(%arg0: i32) -> (i32, i32) {
    %c0_i32 = arith.constant 0 : i32
    %c0_i32_0 = arith.constant 0 : i32
    %c0_i32_1 = arith.constant 0 : i32
    return %c0_i32, %c0_i32_0 : i32, i32
  }
  func.func @transform_5(%arg0: i32) -> (i32, i32) {
    %c0_i32 = arith.constant 0 : i32
    %c0_i32_0 = arith.constant 0 : i32
    %c0_i32_1 = arith.constant 0 : i32
    return %c0_i32, %c0_i32_0 : i32, i32
  }
  func.func @transform_6(%arg0: i32) -> (i32, i32) {
    %c0_i32 = arith.constant 0 : i32
    %c0_i32_0 = arith.constant 0 : i32
    %c0_i32_1 = arith.constant 0 : i32
    return %c0_i32, %c0_i32_0 : i32, i32
  }
  func.func @transform_7(%arg0: i32) -> (i32, i32) {
    %c0_i32 = arith.constant 0 : i32
    %c0_i32_0 = arith.constant 0 : i32
    %c0_i32_1 = arith.constant 0 : i32
    return %c0_i32, %c0_i32_0 : i32, i32
  }
  func.func @transform_8(%arg0: i32) -> (i32, i32) {
    %c0_i32 = arith.constant 0 : i32
    %c0_i32_0 = arith.constant 0 : i32
    %c0_i32_1 = arith.constant 0 : i32
    return %c0_i32, %c0_i32_0 : i32, i32
  }
  func.func @transform_9(%arg0: i32) -> (i32, i32) {
    %c0_i32 = arith.constant 0 : i32
    %c0_i32_0 = arith.constant 0 : i32
    return %arg0, %c0_i32 : i32, i32
  }
}

</mosaic_0001>

<llo_original>
// kernel: fully_connected_forward.1
$region0: #{fully_connected_forward.1}
  #allocation0 [shape = 'u32[]', space=smem, size = 0x4, offset = 0x4, fixed_abs, tag = 'smem constant byte address 0x4 - core index']
  #allocation1 [shape = 'u32[72,128]{1,0:T(1,128)}', space=vmem, size = 0x9000, scoped, tag = 'internal scratch']
  %s0 = inlined_call_operand.vmem [shape: bf16[8,256], index: 0, kind: input, shape index: {}]
  %s1 = inlined_call_operand.vmem [shape: bf16[256,64], index: 1, kind: input, shape index: {}]
  %s2 = inlined_call_operand.vmem [shape: f32[1,64], index: 2, kind: input, shape index: {}]
  %s3 = inlined_call_operand.vmem [shape: bf16[64,32], index: 3, kind: input, shape index: {}]
  %s4 = inlined_call_operand.vmem [shape: f32[1,32], index: 4, kind: input, shape index: {}]
  %s5 = inlined_call_operand.vmem [shape: bf16[32,16], index: 5, kind: input, shape index: {}]
  %s6 = inlined_call_operand.vmem [shape: f32[1,16], index: 6, kind: input, shape index: {}]
  %s7 = inlined_call_operand.vmem [shape: f32[16,10], index: 7, kind: input, shape index: {}]
  %s8 = inlined_call_operand.vmem [shape: f32[1,10], index: 8, kind: input, shape index: {}]
  %s9 = inlined_call_operand.hbm [shape: f32[8,10], index: 9, kind: output, shape index: {}]
  %s10 = sld [smem:[#allocation0]]
  $region46: #{fully_connected_forward.1} parent=0
    _
  %s12 = ssub.s32 1, %s10
  %s13 = scalar_select 0, %s12, %s10
  $region1: #{fully_connected_forward.1} parent=0
    #allocation2 [shape = 'u8[4096]{0}', space=vmem, size = 0x1000, scoped, tag = 'output window, operand 0, single buffered']
    #allocation3 [shape = 's32[1]{0}', space=sflag, size = 0x4, scoped, tag = 'scoped memory for fully_connected_forward.1']
    %14 = vsyncpa [#allocation3], 0
    // Predicated region
    $region2: #{fully_connected_forward.1} parent=1 // pred_check
      _
    $region3: #{fully_connected_forward.1} parent=1 // pred_check_branch
      %16 = sbr.rel (0) target = $region5
    $region4: #{fully_connected_forward.1} parent=1 // pred_region
      _
    $region5: #{fully_connected_forward.1} parent=1 // pred_fallthru
      _
    // Predicated region
    $region6: #{fully_connected_forward.1} parent=1 // pred_check
      _
    $region7: #{fully_connected_forward.1} parent=1 // pred_check_branch
      %18 = sbr.rel (0) target = $region9
    $region8: #{fully_connected_forward.1} parent=1 // pred_region
      _
    $region9: #{fully_connected_forward.1} parent=1 // pred_fallthru
      _
    // Predicated region
    $region10: #{fully_connected_forward.1} parent=1 // pred_check
      _
    $region11: #{fully_connected_forward.1} parent=1 // pred_check_branch
      %20 = sbr.rel (0) target = $region13
    $region12: #{fully_connected_forward.1} parent=1 // pred_region
      _
    $region13: #{fully_connected_forward.1} parent=1 // pred_fallthru
      _
    // Predicated region
    $region14: #{fully_connected_forward.1} parent=1 // pred_check
      _
    $region15: #{fully_connected_forward.1} parent=1 // pred_check_branch
      %22 = sbr.rel (0) target = $region17
    $region16: #{fully_connected_forward.1} parent=1 // pred_region
      _
    $region17: #{fully_connected_forward.1} parent=1 // pred_fallthru
      _
    // Predicated region
    $region18: #{fully_connected_forward.1} parent=1 // pred_check
      _
    $region19: #{fully_connected_forward.1} parent=1 // pred_check_branch
      %24 = sbr.rel (0) target = $region21
    $region20: #{fully_connected_forward.1} parent=1 // pred_region
      _
    $region21: #{fully_connected_forward.1} parent=1 // pred_fallthru
      _
    // Predicated region
    $region22: #{fully_connected_forward.1} parent=1 // pred_check
      _
    $region23: #{fully_connected_forward.1} parent=1 // pred_check_branch
      %26 = sbr.rel (0) target = $region25
    $region24: #{fully_connected_forward.1} parent=1 // pred_region
      _
    $region25: #{fully_connected_forward.1} parent=1 // pred_fallthru
      _
    // Predicated region
    $region26: #{fully_connected_forward.1} parent=1 // pred_check
      _
    $region27: #{fully_connected_forward.1} parent=1 // pred_check_branch
      %28 = sbr.rel (0) target = $region29
    $region28: #{fully_connected_forward.1} parent=1 // pred_region
      _
    $region29: #{fully_connected_forward.1} parent=1 // pred_fallthru
      _
    // Predicated region
    $region30: #{fully_connected_forward.1} parent=1 // pred_check
      _
    $region31: #{fully_connected_forward.1} parent=1 // pred_check_branch
      %30 = sbr.rel (0) target = $region33
    $region32: #{fully_connected_forward.1} parent=1 // pred_region
      _
    $region33: #{fully_connected_forward.1} parent=1 // pred_fallthru
      _
    // Predicated region
    $region34: #{fully_connected_forward.1} parent=1 // pred_check
      _
    $region35: #{fully_connected_forward.1} parent=1 // pred_check_branch
      %32 = sbr.rel (0) target = $region37
    $region36: #{fully_connected_forward.1} parent=1 // pred_region
      _
    $region37: #{fully_connected_forward.1} parent=1 // pred_fallthru
      _
    %v34 = vld [vmem:[%s1] sm:$0xf]
    %v35 = vld [vmem:[%s1 + $0x4] sm:$0xf]
    %v36 = vld [vmem:[%s1 + $0x8] sm:$0xf]
    %v37 = vld [vmem:[%s1 + $0xc] sm:$0xf]
    %v38 = vld [vmem:[%s1 + $0x10] sm:$0xf]
    %v39 = vld [vmem:[%s1 + $0x14] sm:$0xf]
    %v40 = vld [vmem:[%s1 + $0x18] sm:$0xf]
    %v41 = vld [vmem:[%s1 + $0x1c] sm:$0xf]
    %v42 = vld [vmem:[%s1 + $0x20] sm:$0xf]
    %v43 = vld [vmem:[%s1 + $0x24] sm:$0xf]
    %v44 = vld [vmem:[%s1 + $0x28] sm:$0xf]
    %v45 = vld [vmem:[%s1 + $0x2c] sm:$0xf]
    %v46 = vld [vmem:[%s1 + $0x30] sm:$0xf]
    %v47 = vld [vmem:[%s1 + $0x34] sm:$0xf]
    %v48 = vld [vmem:[%s1 + $0x38] sm:$0xf]
    %v49 = vld [vmem:[%s1 + $0x3c] sm:$0xf]
    %v50 = vld [vmem:[%s1 + $0x40] sm:$0xf]
    %v51 = vld [vmem:[%s1 + $0x44] sm:$0xf]
    %v52 = vld [vmem:[%s1 + $0x48] sm:$0xf]
    %v53 = vld [vmem:[%s1 + $0x4c] sm:$0xf]
    %v54 = vld [vmem:[%s1 + $0x50] sm:$0xf]
    %v55 = vld [vmem:[%s1 + $0x54] sm:$0xf]
    %v56 = vld [vmem:[%s1 + $0x58] sm:$0xf]
    %v57 = vld [vmem:[%s1 + $0x5c] sm:$0xf]
    %v58 = vld [vmem:[%s1 + $0x60] sm:$0xf]
    %v59 = vld [vmem:[%s1 + $0x64] sm:$0xf]
    %v60 = vld [vmem:[%s1 + $0x68] sm:$0xf]
    %v61 = vld [vmem:[%s1 + $0x6c] sm:$0xf]
    %v62 = vld [vmem:[%s1 + $0x70] sm:$0xf]
    %v63 = vld [vmem:[%s1 + $0x74] sm:$0xf]
    %v64 = vld [vmem:[%s1 + $0x78] sm:$0xf]
    %v65 = vld [vmem:[%s1 + $0x7c] sm:$0xf]
    %v66 = vld [vmem:[%s2] sm:$0x1]
    %v67 = vld [vmem:[%s3] sm:$0xf]
    %v68 = vld [vmem:[%s3 + $0x4] sm:$0xf]
    %v69 = vld [vmem:[%s3 + $0x8] sm:$0xf]
    %v70 = vld [vmem:[%s3 + $0xc] sm:$0xf]
    %v71 = vld [vmem:[%s3 + $0x10] sm:$0xf]
    %v72 = vld [vmem:[%s3 + $0x14] sm:$0xf]
    %v73 = vld [vmem:[%s3 + $0x18] sm:$0xf]
    %v74 = vld [vmem:[%s3 + $0x1c] sm:$0xf]
    %v75 = vld [vmem:[%s4] sm:$0x1]
    %v76 = vld [vmem:[%s5] sm:$0xf]
    %v77 = vld [vmem:[%s5 + $0x4] sm:$0xf]
    %v78 = vld [vmem:[%s5 + $0x8] sm:$0xf]
    %v79 = vld [vmem:[%s5 + $0xc] sm:$0xf]
    %v80 = vld [vmem:[%s6] sm:$0x1]
    %v81 = vld [vmem:[%s7] sm:$0xff]
    %v82 = vld [vmem:[%s7 + $0x8] sm:$0xff]
    %v83 = vld [vmem:[%s8] sm:$0x1]
    %s84 = smul.u32 0, 2
    %s85 = smul.addr %s84, 4
    %s86 = scalar_lea.vmem %s0, %s85
    %v87 = vld [vmem:[%s86] sm:$0xff]
    %v89 = vperm.slane %v66, 0
    %v92 = vunpack.c.l.b16 %v87
    %v93 = vunpack.c.h.b16 %v87
    %v94 = vpack.c.b16 %v92, %v92
    %v95 = vpack.c.b16 %v93, %v93
    %v130 = vunpack.c.l.b16 %v34
    %v131 = vunpack.c.l.b16 %v35
    %v132 = vunpack.c.l.b16 %v36
    %v133 = vunpack.c.l.b16 %v37
    %v134 = vunpack.c.l.b16 %v38
    %v135 = vunpack.c.l.b16 %v39
    %v136 = vunpack.c.l.b16 %v40
    %v137 = vunpack.c.l.b16 %v41
    %v138 = vunpack.c.l.b16 %v42
    %v139 = vunpack.c.l.b16 %v43
    %v140 = vunpack.c.l.b16 %v44
    %v141 = vunpack.c.l.b16 %v45
    %v142 = vunpack.c.l.b16 %v46
    %v143 = vunpack.c.l.b16 %v47
    %v144 = vunpack.c.l.b16 %v48
    %v145 = vunpack.c.l.b16 %v49
    %v146 = vunpack.c.l.b16 %v50
    %v147 = vunpack.c.l.b16 %v51
    %v148 = vunpack.c.l.b16 %v52
    %v149 = vunpack.c.l.b16 %v53
    %v150 = vunpack.c.l.b16 %v54
    %v151 = vunpack.c.l.b16 %v55
    %v152 = vunpack.c.l.b16 %v56
    %v153 = vunpack.c.l.b16 %v57
    %v154 = vunpack.c.l.b16 %v58
    %v155 = vunpack.c.l.b16 %v59
    %v156 = vunpack.c.l.b16 %v60
    %v157 = vunpack.c.l.b16 %v61
    %v158 = vunpack.c.l.b16 %v62
    %v159 = vunpack.c.l.b16 %v63
    %v160 = vunpack.c.l.b16 %v64
    %v161 = vunpack.c.l.b16 %v65
    %v162 = vpack.c.b16 %v131, %v130
    %v163 = vpack.c.b16 %v133, %v132
    %v164 = vpack.c.b16 %v135, %v134
    %v165 = vpack.c.b16 %v137, %v136
    %v166 = vpack.c.b16 %v139, %v138
    %v167 = vpack.c.b16 %v141, %v140
    %v168 = vpack.c.b16 %v143, %v142
    %v169 = vpack.c.b16 %v145, %v144
    %v170 = vpack.c.b16 %v147, %v146
    %v171 = vpack.c.b16 %v149, %v148
    %v172 = vpack.c.b16 %v151, %v150
    %v173 = vpack.c.b16 %v153, %v152
    %v174 = vpack.c.b16 %v155, %v154
    %v175 = vpack.c.b16 %v157, %v156
    %v176 = vpack.c.b16 %v159, %v158
    %v177 = vpack.c.b16 %v161, %v160
    %194 = vmatpush.bf16.msra.mxu0 %v169
    %195 = vmatpush.bf16.msra.mxu0 %v168
    %196 = vmatpush.bf16.msra.mxu0 %v167
    %197 = vmatpush.bf16.msra.mxu0 %v166
    %198 = vmatpush.bf16.msra.mxu0 %v165
    %199 = vmatpush.bf16.msra.mxu0 %v164
    %200 = vmatpush.bf16.msra.mxu0 %v163
    %201 = vmatpush.bf16.msra.mxu0 %v162
    %202 = vmatmul.bf16.gmra.mxu0 %v94
    %v203 = vpop.f32.mrf.mxu0
    %v204 = vadd.f32 %v89, %v203
    %v205 = vpop.f32.mrf.mxu0
    %206 = vdwg.mxu0
    %207 = vmatpush.bf16.msra.mxu0 %v177
    %208 = vmatpush.bf16.msra.mxu0 %v176
    %209 = vmatpush.bf16.msra.mxu0 %v175
    %210 = vmatpush.bf16.msra.mxu0 %v174
    %211 = vmatpush.bf16.msra.mxu0 %v173
    %212 = vmatpush.bf16.msra.mxu0 %v172
    %213 = vmatpush.bf16.msra.mxu0 %v171
    %214 = vmatpush.bf16.msra.mxu0 %v170
    %215 = vmatmul.bf16.gmra.mxu0 %v95
    %v216 = vpop.f32.mrf.mxu0
    %v217 = vadd.f32 %v204, %v216
    %v218 = vpop.f32.mrf.mxu0
    %219 = vdwg.mxu0
    %v220 = vmax.f32 %v217, 0.0
    %v221 = vpack.c.bf16 %v220, %v220
    %v223 = vperm.slane %v75, 0
    %v233 = vunpack.c.l.b16 %v67
    %v234 = vunpack.c.l.b16 %v68
    %v235 = vunpack.c.l.b16 %v69
    %v236 = vunpack.c.l.b16 %v70
    %v237 = vunpack.c.l.b16 %v71
    %v238 = vunpack.c.l.b16 %v72
    %v239 = vunpack.c.l.b16 %v73
    %v240 = vunpack.c.l.b16 %v74
    %v241 = vpack.c.b16 %v234, %v233
    %v242 = vpack.c.b16 %v236, %v235
    %v243 = vpack.c.b16 %v238, %v237
    %v244 = vpack.c.b16 %v240, %v239
    %vm249 = vcmask 523264
    %v251 = vsel %vm249, %v221, 0
    %253 = vmatpush.bf16.msra.mxu0 0
    %254 = vmatpush.bf16.msra.mxu0 0
    %255 = vmatpush.bf16.msra.mxu0 0
    %256 = vmatpush.bf16.msra.mxu0 0
    %257 = vmatpush.bf16.msra.mxu0 %v244
    %258 = vmatpush.bf16.msra.mxu0 %v243
    %259 = vmatpush.bf16.msra.mxu0 %v242
    %260 = vmatpush.bf16.msra.mxu0 %v241
    %261 = vmatmul.bf16.gmra.mxu0 %v251
    %v262 = vpop.f32.mrf.mxu0
    %v263 = vadd.f32 %v223, %v262
    %v264 = vpop.f32.mrf.mxu0
    %265 = vdwg.mxu0
    %v266 = vmax.f32 %v263, 0.0
    %v267 = vpack.c.bf16 %v266, %v266
    %v269 = vperm.slane %v80, 0
    %v275 = vunpack.c.l.b16 %v76
    %v276 = vunpack.c.l.b16 %v77
    %v277 = vunpack.c.l.b16 %v78
    %v278 = vunpack.c.l.b16 %v79
    %v279 = vpack.c.b16 %v276, %v275
    %v280 = vpack.c.b16 %v278, %v277
    %vm283 = vcmask 261120
    %v285 = vsel %vm283, %v267, 0
    %287 = vmatpush.bf16.msra.mxu0 0
    %288 = vmatpush.bf16.msra.mxu0 0
    %289 = vmatpush.bf16.msra.mxu0 0
    %290 = vmatpush.bf16.msra.mxu0 0
    %291 = vmatpush.bf16.msra.mxu0 0
    %292 = vmatpush.bf16.msra.mxu0 0
    %293 = vmatpush.bf16.msra.mxu0 %v280
    %294 = vmatpush.bf16.msra.mxu0 %v279
    %295 = vmatmul.bf16.gmra.mxu0 %v285
    %v296 = vpop.f32.mrf.mxu0
    %v297 = vadd.f32 %v269, %v296
    %v298 = vpop.f32.mrf.mxu0
    %299 = vdwg.mxu0
    %vm300 = vcmp.gt.f32.partialorder %v297, 0.0
    %v301 = vmul.f32 %v297, 0.01
    %v302 = vsel %vm300, %v297, %v301
    %v304 = vperm.slane %v83, 0
    %vm306 = vcmask 130048
    %v308 = vsel %vm306, %v302, 0
    %310 = vmatpush.msra.mxu0 0.0
    %311 = vmatpush.msra.mxu0 0.0
    %312 = vmatpush.msra.mxu0 0.0
    %313 = vmatpush.msra.mxu0 0.0
    %314 = vmatpush.msra.mxu0 0.0
    %315 = vmatpush.msra.mxu0 0.0
    %316 = vmatpush.msra.mxu0 0.0
    %317 = vmatpush.msra.mxu0 0.0
    %318 = vmatpush.msra.mxu0 0.0
    %319 = vmatpush.msra.mxu0 0.0
    %320 = vmatpush.msra.mxu0 0.0
    %321 = vmatpush.msra.mxu0 0.0
    %322 = vmatpush.msra.mxu0 0.0
    %323 = vmatpush.msra.mxu0 0.0
    %324 = vmatpush.msra.mxu0 %v82
    %325 = vmatpush.msra.mxu0 %v81
    %326 = vmatmul.f32.gmra.mxu0 %v308
    %v327 = vpop.f32.mrf.mxu0
    %v328 = vadd.f32 %v304, %v327
    %329 = vdwg.mxu0
    %vm330 = vcmask 80896
    %v331 = vsel %vm330, %v328, -inf
    %332 = vmax.xlane.f32.xlu0 %v331
    %v333 = vpop.xlane.xlu0 %332
    %v334 = vsub.f32 %v328, %v333
    %v335 = vmul.f32 %v334, 1.442695
    %v336 = vpow.pop %v335
    %v337 = vsel %vm330, %v336, 0.0
    %338 = vadd.xlane.f32.xlu0 %v337
    %v339 = vpop.xlane.xlu0 %338
    %v340 = vrcp.pop %v339
    %v341 = vmul.f32 %v339, %v340
    %v342 = vsub.f32 1.0, %v341
    %v343 = vmul.f32 %v340, %v342
    %v344 = vadd.f32 %v340, %v343
    %vm345 = vweird.f32 %v339
    %vm346 = vweird.f32 %v340
    %vm347 = vmor %vm345, %vm346
    %v348 = vsel %vm347, %v340, %v344
    %v349 = vand.u32 2147483647, %v339
    %vm350 = vcmp.eq.f32.partialorder %v349, 8.507059e+37
    %v351 = vand.u32 %v339, 2147483648
    %v352 = vor.u32 1.1754944e-38, %v351
    %v353 = vsel %vm350, %v352, %v348
    %v354 = vmul.f32 %v336, %v353
    %355 = vst.msk [vmem:[#allocation2] sm:$0xff] %vm330, %v354
    // Predicated region
    $region38: #{fully_connected_forward.1} parent=1 // pred_check
      _
    $region39: #{fully_connected_forward.1} parent=1 // pred_check_branch
      %357 = sbr.rel (0) target = $region41
    $region40: #{fully_connected_forward.1} parent=1 // pred_region
      %359 = vsyncadd [#allocation3], 0
      %s361 = sshll.u32 [#allocation2], 4
      %s362 = int_to_ptr.vmem [resolvable:$true] %s361
      %s363 = sshll.u32 %s9, 4
      %s364 = int_to_ptr.hbm [resolvable:$true] %s363
      %366 = dma.vmem_to_hbm [thread:$0]  %s362, 128, %s364, [#allocation3]
    $region41: #{fully_connected_forward.1} parent=1 // pred_fallthru
      _
    // Predicated region
    $region42: #{fully_connected_forward.1} parent=1 // pred_check
      _
    $region43: #{fully_connected_forward.1} parent=1 // pred_check_branch
      %368 = sbr.rel (0) target = $region45
    $region44: #{fully_connected_forward.1} parent=1 // pred_region
      %370 = dma.done [#allocation3], 128
    $region45: #{fully_connected_forward.1} parent=1 // pred_fallthru
      _
    %371 = vsyncpa [#allocation3], 1

</llo_original>
